<compile_context>
chip_gen: v7x
topology: tpu7x:2x2x1
jax: 0.10.0
libtpu: 0.0.40
codegen_flags: <defaults>
</compile_context>

<pallas_src>
import functools
from typing import NamedTuple

import jax
import jax.numpy as jnp
import numpy as np
from jax.experimental import pallas as pl
from jax.experimental.pallas import tpu as pltpu

LANES = 128
SUB_TILE = 8 * LANES          # faces per (8,128) vreg tile
_EPS = 1e-15
_PR = 0.33                    # Poisson ratio fixed in the torch module default


def _round_up(x, m):
    return ((x + m - 1) // m) * m


def _round_down(x, m):
    return max(m, (x // m) * m)


def _cdiv(a, b):
    return -(-a // b)


def _vmem_budget_bytes():
    """Per-generation VMEM budget (leave headroom under the physical capacity)."""
    cap = 128 * 1024 * 1024
    try:
        info = pltpu.get_tpu_info()
        cap = int(getattr(info, "vmem_capacity_bytes", cap))
    except Exception:
        pass
    if cap <= 64 * 1024 * 1024:          # v7x-class (64 MiB physical)
        return 44 * 1024 * 1024
    return 96 * 1024 * 1024              # v5e / v6e (128 MiB physical)


def _default_n_par():
    """1 on single-TC chips (v5e/v6e); 2 if multiple TensorCores are detected."""
    try:
        info = pltpu.get_tpu_info()
    except Exception:
        return 1
    for attr in ("num_tensorcores", "tensorcore_count", "num_cores", "core_count"):
        v = getattr(info, attr, None)
        if isinstance(v, int) and v >= 1:
            return min(int(v), 2)
    return 1


# ----------------------------------------------------------------------------
# Pallas kernel
# ----------------------------------------------------------------------------
def _cstri_kernel(lm_ref, edges_ref, params_ref, out_ref, acc_ref):
    k = pl.program_id(1)                      # reduction step within this slice

    @pl.when(k == 0)
    def _():
        acc_ref[...] = jnp.zeros_like(acc_ref)

    lam = lm_ref[0]                           # Lame params precomputed on host (SMEM)
    mu = lm_ref[1]

    edges = edges_ref[...]                    # (6, B, R, 128)
    params = params_ref[...]                  # (5, R, 128)

    # Component / parameter selection = free leading-axis indices (dense vregs).
    e1x, e1y, e1z = edges[0], edges[1], edges[2]          # (B, R, 128)
    e2x, e2y, e2z = edges[3], edges[4], edges[5]
    a00, a01, a10, a11 = params[0], params[1], params[2], params[3]   # (R, 128)
    scale = params[4]                                     # rest_area * thickness

    # FT = edges_def^T @ A_inv^T ; the two columns of FT, per xyz component.
    ft0x = e1x * a00 + e2x * a01
    ft0y = e1y * a00 + e2y * a01
    ft0z = e1z * a00 + e2z * a01
    ft1x = e1x * a10 + e2x * a11
    ft1y = e1y * a10 + e2y * a11
    ft1z = e1z * a10 + e2z * a11

    # Cauchy-Green CG = F F^T (2x2 symmetric).
    c00 = ft0x * ft0x + ft0y * ft0y + ft0z * ft0z         # (B, R, 128)
    c11 = ft1x * ft1x + ft1y * ft1y + ft1z * ft1z
    c01 = ft0x * ft1x + ft0y * ft1y + ft0z * ft1z

    # Analytic eigenvalues of the 2x2 symmetric CG (principal stretches^2).
    tr = c00 + c11
    det = c00 * c11 - c01 * c01
    a = jnp.maximum(0.25 * tr * tr - det, _EPS)
    rh = jnp.sqrt(a)
    emin = jnp.maximum(0.5 * tr - rh, _EPS)
    emax = jnp.maximum(0.5 * tr + rh, _EPS)

    # Relaxed neo-Hookean (tension-field relaxation). Unconditional max() is
    # equivalent to the reference's masked assignment because the emax<1 branch
    # is zeroed afterwards; _EPS clamps keep rsqrt/log finite on both where sides.
    emin = jnp.maximum(emin, jax.lax.rsqrt(emax))

    ic = emax + emin
    iic = emax * emin
    log_j = 0.5 * jnp.log(iic)                # log(sqrt(iic)) without the sqrt
    ed = 0.5 * mu * (ic - 2.0) - mu * log_j + 0.5 * lam * (log_j * log_j)
    ed = jnp.where(emax < 1.0, 0.0, ed)       # compression relaxation; also kills pads

    acc_ref[...] += ed * scale                # per-face partial energies (B, R, 128)

    @pl.when(k == pl.num_programs(1) - 1)
    def _():
        red = jnp.sum(acc_ref[...], axis=-1)  # (B, R)
        red = jnp.sum(red, axis=-1)           # (B,)
        out_ref[...] = red[None, :, None]     # (1, B, 1)


# ----------------------------------------------------------------------------
# Init-time preprocessing (mirrors CSTri.__init__), plain JAX glue.
# ----------------------------------------------------------------------------
def get_edges_2d(vertices_ref, faces):
    tri = vertices_ref[faces]                          # (F, 3, 3)
    edges = (tri - tri[:, :1])[:, 1:]                  # (F, 2, 3)
    e0 = edges[:, 0]
    e1 = edges[:, 1]
    b0 = e0 / jnp.linalg.norm(e0, axis=-1, keepdims=True)
    n = jnp.cross(b0, e1)
    b1 = jnp.cross(n, e0)
    b1 = b1 / jnp.linalg.norm(b1, axis=-1, keepdims=True)
    row0 = jnp.stack([(e0 * b0).sum(-1), (e0 * b1).sum(-1)], axis=-1)
    row1 = jnp.stack([(e1 * b0).sum(-1), (e1 * b1).sum(-1)], axis=-1)
    return jnp.stack([row0, row1], axis=-2)            # (F, 2, 2)


def precompute_reference(vertices_ref, faces):
    edges_ref_2d = get_edges_2d(vertices_ref, faces)   # (F, 2, 2)
    a00 = edges_ref_2d[:, 0, 0]
    a01 = edges_ref_2d[:, 0, 1]
    a10 = edges_ref_2d[:, 1, 0]
    a11 = edges_ref_2d[:, 1, 1]
    det = a00 * a11 - a01 * a10
    inv = jnp.stack([
        jnp.stack([a11, -a01], axis=-1),
        jnp.stack([-a10, a00], axis=-1),
    ], axis=-2) / det[:, None, None]                   # (F, 2, 2)
    rest_areas = jnp.abs(det) * 0.5                    # (F,)
    return inv, rest_areas


class CSTriPrep(NamedTuple):
    params5: jnp.ndarray      # (5, total_rows, 128) A_inv rows + area*thickness
    gather_idx: jnp.ndarray   # (3F,) stacked face-vertex indices
    F: int
    Fp: int
    tile_rows: int            # sublane rows per grid step (tile_f // 128)
    n_par: int
    n_tiles: int
    total_rows: int           # Fp // 128
    vmem_limit: int


def cstri_precompute(vertices_ref, faces, thicknesses, *, batch_size=1,
                     tile_f=16384, n_par=None):
    """Static per-mesh preprocessing: A_inv/areas, padded param slab, gather
    indices, tile/grid sizing and VMEM budget (generation-aware)."""
    faces = jnp.asarray(faces, jnp.int32)
    F = int(faces.shape[0])
    ainv, rest_areas = precompute_reference(vertices_ref.astype(jnp.float32), faces)

    if n_par is None:
        n_par = _default_n_par()
    n_par = max(1, int(n_par))

    B = int(batch_size)
    budget = _vmem_budget_bytes()
    # double-buffered edges (6B rows) + params (5 rows) + acc scratch (B rows), f32
    per_face_bytes = (2 * (6 * B + 5) + B) * 4
    max_tile_by_vmem = _round_down(budget // (2 * per_face_bytes), SUB_TILE)

    tile_f = _round_up(max(int(tile_f), SUB_TILE), SUB_TILE)
    tile_f = min(tile_f, max_tile_by_vmem)
    tile_f = min(tile_f, _round_up(_cdiv(F, n_par), SUB_TILE))

    n_tiles_total = _cdiv(F, tile_f)
    n_par = max(1, min(n_par, n_tiles_total))
    n_tiles = _cdiv(n_tiles_total, n_par)
    Fp = n_par * n_tiles * tile_f
    pad = Fp - F
    total_rows = Fp // LANES
    tile_rows = tile_f // LANES

    vmem_need = per_face_bytes * tile_f
    vmem_limit = int(min(budget, max(16 << 20, 2 * vmem_need)))

    scale = (rest_areas.astype(jnp.float32).reshape(F)
             * jnp.broadcast_to(jnp.asarray(thicknesses, jnp.float32), (F,)))
    params5 = jnp.stack([ainv[:, 0, 0], ainv[:, 0, 1],
                         ainv[:, 1, 0], ainv[:, 1, 1], scale],
                        axis=0).astype(jnp.float32)                # (5, F)
    params5 = jnp.pad(params5, ((0, 0), (0, pad))).reshape(5, total_rows, LANES)

    gather_idx = jnp.concatenate([faces[:, 0], faces[:, 1], faces[:, 2]])  # (3F,)

    return CSTriPrep(params5, gather_idx, F, Fp, tile_rows, n_par, n_tiles,
                     total_rows, vmem_limit)


# ----------------------------------------------------------------------------
# Per-call wrapper (gather + pallas_call)
# ----------------------------------------------------------------------------
def cstri_energy_pallas(prep, vertices, youngmoduli):
    vertices = vertices.astype(jnp.float32)
    B = vertices.shape[0]
    F = prep.F
    n_tiles = prep.n_tiles

    # One stacked-index gather in channels-major layout, edges built directly
    # into the padded slab (no separate concat+pad passes over face-sized data).
    vt = jnp.transpose(vertices, (2, 0, 1))                # (3, B, V)
    g = jnp.take(vt, prep.gather_idx, axis=2)              # (3, B, 3F)
    v0 = g[:, :, :F]
    e1 = g[:, :, F:2 * F] - v0                             # (3, B, F)
    e2 = g[:, :, 2 * F:] - v0
    edges6 = jnp.zeros((6, B, prep.Fp), jnp.float32)
    edges6 = jax.lax.dynamic_update_slice(edges6, e1, (0, 0, 0))
    edges6 = jax.lax.dynamic_update_slice(edges6, e2, (3, 0, 0))
    edges6 = edges6.reshape(6, B, prep.total_rows, LANES)  # (6, B, rows, 128)

    # Lame parameters from Young's modulus, computed on host, shipped via SMEM.
    ym = jnp.asarray(youngmoduli, jnp.float32)
    lam = ym * _PR / ((1.0 + _PR) * (1.0 - 2.0 * _PR))
    mu = ym / (2.0 * (1.0 + _PR))
    lam_mu = jnp.stack([lam, mu]).astype(jnp.float32)      # (2,)

    out = pl.pallas_call(
        _cstri_kernel,
        out_shape=jax.ShapeDtypeStruct((prep.n_par, B, 1), jnp.float32),
        grid_spec=pltpu.PrefetchScalarGridSpec(
            num_scalar_prefetch=0,
            grid=(prep.n_par, n_tiles),
            in_specs=[
                pl.BlockSpec(memory_space=pltpu.MemorySpace.SMEM),      # lam/mu (2,)
                pl.BlockSpec((6, B, prep.tile_rows, LANES),
                             lambda p, k: (0, 0, p * n_tiles + k, 0)),  # edges6
                pl.BlockSpec((5, prep.tile_rows, LANES),
                             lambda p, k: (0, p * n_tiles + k, 0)),     # params5
            ],
            out_specs=pl.BlockSpec((1, B, 1), lambda p, k: (p, 0, 0)),
            scratch_shapes=[pltpu.VMEM((B, prep.tile_rows, LANES), jnp.float32)],
        ),
        compiler_params=pltpu.CompilerParams(
            dimension_semantics=("parallel", "arbitrary"),
            vmem_limit_bytes=prep.vmem_limit),
    )(lam_mu, edges6, prep.params5)

    return jnp.sum(out, axis=0)[:, 0]                      # (B,)


def make_cstri_energy_fn(prep):
    """Jitted forward closed over the static per-mesh preprocessing."""
    return jax.jit(functools.partial(cstri_energy_pallas, prep))


# ----------------------------------------------------------------------------
# Pure-JAX reference of the torch forward (for validation)
# ----------------------------------------------------------------------------
def cstri_energy_reference(vertices, faces, ainv, rest_areas, ym, thick):
    lam = ym * _PR / ((1.0 + _PR) * (1.0 - 2.0 * _PR))
    mu = ym / (2.0 * (1.0 + _PR))
    tri = vertices[:, faces]                            # (B, F, 3, 3)
    edges_def = (tri - tri[:, :, :1])[:, :, 1:]         # (B, F, 2, 3)
    FT = jnp.matmul(jnp.swapaxes(edges_def, 2, 3),
                    jnp.swapaxes(ainv, 1, 2)[None])     # (B, F, 3, 2)
    c00 = jnp.sum(FT[..., 0] ** 2, -1)
    c11 = jnp.sum(FT[..., 1] ** 2, -1)
    c01 = jnp.sum(FT[..., 0] * FT[..., 1], -1)
    tr = c00 + c11
    det = c00 * c11 - c01 * c01
    a = jnp.maximum(0.25 * tr * tr - det, _EPS)
    rh = jnp.sqrt(a)
    emin = jnp.maximum(0.5 * tr - rh, _EPS)
    emax = jnp.maximum(0.5 * tr + rh, _EPS)
    emt = 1.0 / jnp.sqrt(emax)
    c0 = emax < 1.0
    c1 = jnp.logical_and(emax >= 1.0, emt > emin)
    emin = jnp.where(c1, emt, emin)
    ic = emax + emin
    log_j = jnp.log(jnp.sqrt(emax * emin))
    ed = 0.5 * mu * (ic - 2.0) - mu * log_j + 0.5 * lam * log_j ** 2
    ed = jnp.where(c0, 0.0, ed)
    energies = ed * rest_areas[None, :] * thick
    return energies.sum(-1)


# ----------------------------------------------------------------------------
def make_grid_mesh(nx=4, ny=4):
    """Simple planar triangulated grid: (V, 3) vertices, (F, 3) int faces."""
    xs, ys = np.meshgrid(np.arange(nx, dtype=np.float32),
                         np.arange(ny, dtype=np.float32), indexing="ij")
    verts = np.stack([xs.ravel(), ys.ravel(), np.zeros(nx * ny, np.float32)],
                     axis=-1)
    faces = []
    for i in range(nx - 1):
        for j in range(ny - 1):
            v00 = i * ny + j
            v01 = i * ny + j + 1
            v10 = (i + 1) * ny + j
            v11 = (i + 1) * ny + j + 1
            faces.append([v00, v10, v11])
            faces.append([v00, v11, v01])
    return (jnp.asarray(verts, jnp.float32),
            jnp.asarray(np.array(faces, np.int32)))


if __name__ == "__main__":
    B = 2
    youngmoduli = 0.05      # MPa
    thickness = 0.001
    key = jax.random.PRNGKey(0)
    k1, k2 = jax.random.split(key)
    stretch = jnp.array([1.10, 1.05, 1.0], dtype=jnp.float32)

    # --- Test 1: small mesh (single tile, default tile sizing) ----------------
    vertices_ref, faces = make_grid_mesh(4, 4)          # V=16, F=18
    V = vertices_ref.shape[0]
    ainv, rest_areas = precompute_reference(vertices_ref, faces)
    prep = cstri_precompute(vertices_ref, faces, thickness, batch_size=B)
    fwd = make_cstri_energy_fn(prep)

    noise = 0.02 * jax.random.normal(k1, (B, V, 3), dtype=jnp.float32)
    vertices = vertices_ref[None] * stretch + noise     # (B, V, 3)

    out = jax.block_until_ready(fwd(vertices, youngmoduli))
    ref = jax.block_until_ready(
        cstri_energy_reference(vertices, faces, ainv, rest_areas,
                               youngmoduli, thickness))
    if not np.allclose(np.asarray(out), np.asarray(ref), rtol=1e-4, atol=1e-7):
        raise AssertionError(f"mismatch (small): pallas={out} ref={ref}")

    # --- Test 2: larger mesh exercising multi-step reduction + parallel axis ---
    vertices_ref2, faces2 = make_grid_mesh(40, 40)      # V=1600, F=3042
    V2 = vertices_ref2.shape[0]
    ainv2, rest_areas2 = precompute_reference(vertices_ref2, faces2)
    prep2 = cstri_precompute(vertices_ref2, faces2, thickness, batch_size=B,
                             tile_f=1024, n_par=2)
    fwd2 = make_cstri_energy_fn(prep2)

    noise2 = 0.02 * jax.random.normal(k2, (B, V2, 3), dtype=jnp.float32)
    vertices2 = vertices_ref2[None] * stretch + noise2

    out2 = jax.block_until_ready(fwd2(vertices2, youngmoduli))
    ref2 = jax.block_until_ready(
        cstri_energy_reference(vertices2, faces2, ainv2, rest_areas2,
                               youngmoduli, thickness))
    if not np.allclose(np.asarray(out2), np.asarray(ref2), rtol=1e-4, atol=1e-6):
        raise AssertionError(f"mismatch (multi-tile): pallas={out2} ref={ref2}")

    print("KERNEL_OK")
</pallas_src>

<mosaic_0001>
module attributes {stable_mosaic.version = 11 : i64} {
  func.func @_cstri_kernel(%arg0: i32, %arg1: i32, %arg2: memref<2xf32, #tpu.memory_space<smem>>, %arg3: memref<6x2x8x128xf32, #tpu.memory_space<vmem>>, %arg4: memref<5x8x128xf32, #tpu.memory_space<vmem>>, %arg5: memref<1x2x1xf32, #tpu.memory_space<vmem>>, %arg6: memref<2x8x128xf32, #tpu.memory_space<vmem>>) attributes {dimension_semantics = [#tpu.dimension_semantics<parallel>, #tpu.dimension_semantics<arbitrary>], iteration_bounds = array<i64: 1, 1>, scalar_prefetch = 0 : i64, scratch_operands = 1 : i64, tpu.core_type = #tpu.core_type<tc>, window_params = [{transform_indices = @transform_0, window_bounds = array<i64: 2>}, {transform_indices = @transform_1, window_bounds = array<i64: 6, 2, 8, 128>}, {transform_indices = @transform_2, window_bounds = array<i64: 5, 8, 128>}, {transform_indices = @transform_3, window_bounds = array<i64: 1, 2, 1>}]} {
    %c0_i32 = arith.constant 0 : i32
    %0 = arith.cmpi eq, %arg1, %c0_i32 : i32
    %1 = arith.extui %0 : i1 to i32
    %c0_i32_0 = arith.constant 0 : i32
    %2 = arith.cmpi ne, %1, %c0_i32_0 : i32
    scf.if %2 {
      %cst_27 = arith.constant 0.000000e+00 : f32
      %140 = vector.broadcast %cst_27 : f32 to vector<2x8x128xf32>
      %c0_28 = arith.constant 0 : index
      %c0_29 = arith.constant 0 : index
      %c0_30 = arith.constant 0 : index
      %141 = vector.load %arg6[%c0_28, %c0_29, %c0_30] : memref<2x8x128xf32, #tpu.memory_space<vmem>>, vector<2x8x128xf32>
      tpu.vector_store %arg6[%c0_28, %c0_29, %c0_30], %140 {strides = array<i32>} : memref<2x8x128xf32, #tpu.memory_space<vmem>>, vector<2x8x128xf32>,
    } else {
    }
    %c0 = arith.constant 0 : index
    %3 = memref.load %arg2[%c0] : memref<2xf32, #tpu.memory_space<smem>>
    %c1 = arith.constant 1 : index
    %4 = memref.load %arg2[%c1] : memref<2xf32, #tpu.memory_space<smem>>
    %c0_1 = arith.constant 0 : index
    %c0_2 = arith.constant 0 : index
    %c0_3 = arith.constant 0 : index
    %c0_4 = arith.constant 0 : index
    %5 = vector.load %arg3[%c0_1, %c0_2, %c0_3, %c0_4] : memref<6x2x8x128xf32, #tpu.memory_space<vmem>>, vector<6x2x8x128xf32>
    %c0_5 = arith.constant 0 : index
    %c0_6 = arith.constant 0 : index
    %c0_7 = arith.constant 0 : index
    %6 = vector.load %arg4[%c0_5, %c0_6, %c0_7] : memref<5x8x128xf32, #tpu.memory_space<vmem>>, vector<5x8x128xf32>
    %7 = vector.extract_strided_slice %5 {offsets = [0, 0, 0, 0], sizes = [1, 2, 8, 128], strides = [1, 1, 1, 1]} : vector<6x2x8x128xf32> to vector<1x2x8x128xf32>
    %8 = vector.shape_cast %7 : vector<1x2x8x128xf32> to vector<2x8x128xf32>
    %9 = vector.extract_strided_slice %5 {offsets = [1, 0, 0, 0], sizes = [1, 2, 8, 128], strides = [1, 1, 1, 1]} : vector<6x2x8x128xf32> to vector<1x2x8x128xf32>
    %10 = vector.shape_cast %9 : vector<1x2x8x128xf32> to vector<2x8x128xf32>
    %11 = vector.extract_strided_slice %5 {offsets = [2, 0, 0, 0], sizes = [1, 2, 8, 128], strides = [1, 1, 1, 1]} : vector<6x2x8x128xf32> to vector<1x2x8x128xf32>
    %12 = vector.shape_cast %11 : vector<1x2x8x128xf32> to vector<2x8x128xf32>
    %13 = vector.extract_strided_slice %5 {offsets = [3, 0, 0, 0], sizes = [1, 2, 8, 128], strides = [1, 1, 1, 1]} : vector<6x2x8x128xf32> to vector<1x2x8x128xf32>
    %14 = vector.shape_cast %13 : vector<1x2x8x128xf32> to vector<2x8x128xf32>
    %15 = vector.extract_strided_slice %5 {offsets = [4, 0, 0, 0], sizes = [1, 2, 8, 128], strides = [1, 1, 1, 1]} : vector<6x2x8x128xf32> to vector<1x2x8x128xf32>
    %16 = vector.shape_cast %15 : vector<1x2x8x128xf32> to vector<2x8x128xf32>
    %17 = vector.extract_strided_slice %5 {offsets = [5, 0, 0, 0], sizes = [1, 2, 8, 128], strides = [1, 1, 1, 1]} : vector<6x2x8x128xf32> to vector<1x2x8x128xf32>
    %18 = vector.shape_cast %17 : vector<1x2x8x128xf32> to vector<2x8x128xf32>
    %19 = vector.extract_strided_slice %6 {offsets = [0, 0, 0], sizes = [1, 8, 128], strides = [1, 1, 1]} : vector<5x8x128xf32> to vector<1x8x128xf32>
    %20 = vector.shape_cast %19 : vector<1x8x128xf32> to vector<8x128xf32>
    %21 = vector.extract_strided_slice %6 {offsets = [1, 0, 0], sizes = [1, 8, 128], strides = [1, 1, 1]} : vector<5x8x128xf32> to vector<1x8x128xf32>
    %22 = vector.shape_cast %21 : vector<1x8x128xf32> to vector<8x128xf32>
    %23 = vector.extract_strided_slice %6 {offsets = [2, 0, 0], sizes = [1, 8, 128], strides = [1, 1, 1]} : vector<5x8x128xf32> to vector<1x8x128xf32>
    %24 = vector.shape_cast %23 : vector<1x8x128xf32> to vector<8x128xf32>
    %25 = vector.extract_strided_slice %6 {offsets = [3, 0, 0], sizes = [1, 8, 128], strides = [1, 1, 1]} : vector<5x8x128xf32> to vector<1x8x128xf32>
    %26 = vector.shape_cast %25 : vector<1x8x128xf32> to vector<8x128xf32>
    %27 = vector.extract_strided_slice %6 {offsets = [4, 0, 0], sizes = [1, 8, 128], strides = [1, 1, 1]} : vector<5x8x128xf32> to vector<1x8x128xf32>
    %28 = vector.shape_cast %27 : vector<1x8x128xf32> to vector<8x128xf32>
    %29 = vector.shape_cast %20 : vector<8x128xf32> to vector<1x8x128xf32>
    %30 = vector.broadcast %29 : vector<1x8x128xf32> to vector<2x8x128xf32>
    %31 = arith.mulf %8, %30 : vector<2x8x128xf32>
    %32 = vector.shape_cast %22 : vector<8x128xf32> to vector<1x8x128xf32>
    %33 = vector.broadcast %32 : vector<1x8x128xf32> to vector<2x8x128xf32>
    %34 = arith.mulf %14, %33 : vector<2x8x128xf32>
    %35 = arith.addf %31, %34 : vector<2x8x128xf32>
    %36 = vector.shape_cast %20 : vector<8x128xf32> to vector<1x8x128xf32>
    %37 = vector.broadcast %36 : vector<1x8x128xf32> to vector<2x8x128xf32>
    %38 = arith.mulf %10, %37 : vector<2x8x128xf32>
    %39 = vector.shape_cast %22 : vector<8x128xf32> to vector<1x8x128xf32>
    %40 = vector.broadcast %39 : vector<1x8x128xf32> to vector<2x8x128xf32>
    %41 = arith.mulf %16, %40 : vector<2x8x128xf32>
    %42 = arith.addf %38, %41 : vector<2x8x128xf32>
    %43 = vector.shape_cast %20 : vector<8x128xf32> to vector<1x8x128xf32>
    %44 = vector.broadcast %43 : vector<1x8x128xf32> to vector<2x8x128xf32>
    %45 = arith.mulf %12, %44 : vector<2x8x128xf32>
    %46 = vector.shape_cast %22 : vector<8x128xf32> to vector<1x8x128xf32>
    %47 = vector.broadcast %46 : vector<1x8x128xf32> to vector<2x8x128xf32>
    %48 = arith.mulf %18, %47 : vector<2x8x128xf32>
    %49 = arith.addf %45, %48 : vector<2x8x128xf32>
    %50 = vector.shape_cast %24 : vector<8x128xf32> to vector<1x8x128xf32>
    %51 = vector.broadcast %50 : vector<1x8x128xf32> to vector<2x8x128xf32>
    %52 = arith.mulf %8, %51 : vector<2x8x128xf32>
    %53 = vector.shape_cast %26 : vector<8x128xf32> to vector<1x8x128xf32>
    %54 = vector.broadcast %53 : vector<1x8x128xf32> to vector<2x8x128xf32>
    %55 = arith.mulf %14, %54 : vector<2x8x128xf32>
    %56 = arith.addf %52, %55 : vector<2x8x128xf32>
    %57 = vector.shape_cast %24 : vector<8x128xf32> to vector<1x8x128xf32>
    %58 = vector.broadcast %57 : vector<1x8x128xf32> to vector<2x8x128xf32>
    %59 = arith.mulf %10, %58 : vector<2x8x128xf32>
    %60 = vector.shape_cast %26 : vector<8x128xf32> to vector<1x8x128xf32>
    %61 = vector.broadcast %60 : vector<1x8x128xf32> to vector<2x8x128xf32>
    %62 = arith.mulf %16, %61 : vector<2x8x128xf32>
    %63 = arith.addf %59, %62 : vector<2x8x128xf32>
    %64 = vector.shape_cast %24 : vector<8x128xf32> to vector<1x8x128xf32>
    %65 = vector.broadcast %64 : vector<1x8x128xf32> to vector<2x8x128xf32>
    %66 = arith.mulf %12, %65 : vector<2x8x128xf32>
    %67 = vector.shape_cast %26 : vector<8x128xf32> to vector<1x8x128xf32>
    %68 = vector.broadcast %67 : vector<1x8x128xf32> to vector<2x8x128xf32>
    %69 = arith.mulf %18, %68 : vector<2x8x128xf32>
    %70 = arith.addf %66, %69 : vector<2x8x128xf32>
    %71 = arith.mulf %35, %35 : vector<2x8x128xf32>
    %72 = arith.mulf %42, %42 : vector<2x8x128xf32>
    %73 = arith.addf %71, %72 : vector<2x8x128xf32>
    %74 = arith.mulf %49, %49 : vector<2x8x128xf32>
    %75 = arith.addf %73, %74 : vector<2x8x128xf32>
    %76 = arith.mulf %56, %56 : vector<2x8x128xf32>
    %77 = arith.mulf %63, %63 : vector<2x8x128xf32>
    %78 = arith.addf %76, %77 : vector<2x8x128xf32>
    %79 = arith.mulf %70, %70 : vector<2x8x128xf32>
    %80 = arith.addf %78, %79 : vector<2x8x128xf32>
    %81 = arith.mulf %35, %56 : vector<2x8x128xf32>
    %82 = arith.mulf %42, %63 : vector<2x8x128xf32>
    %83 = arith.addf %81, %82 : vector<2x8x128xf32>
    %84 = arith.mulf %49, %70 : vector<2x8x128xf32>
    %85 = arith.addf %83, %84 : vector<2x8x128xf32>
    %86 = arith.addf %75, %80 : vector<2x8x128xf32>
    %87 = arith.mulf %75, %80 : vector<2x8x128xf32>
    %88 = arith.mulf %85, %85 : vector<2x8x128xf32>
    %89 = arith.subf %87, %88 : vector<2x8x128xf32>
    %cst = arith.constant 2.500000e-01 : f32
    %90 = vector.broadcast %cst : f32 to vector<2x8x128xf32>
    %91 = arith.mulf %90, %86 : vector<2x8x128xf32>
    %92 = arith.mulf %91, %86 : vector<2x8x128xf32>
    %93 = arith.subf %92, %89 : vector<2x8x128xf32>
    %cst_8 = arith.constant 1.000000e-15 : f32
    %94 = vector.broadcast %cst_8 : f32 to vector<2x8x128xf32>
    %95 = arith.maximumf %93, %94 : vector<2x8x128xf32>
    %96 = math.sqrt %95 : vector<2x8x128xf32>
    %cst_9 = arith.constant 5.000000e-01 : f32
    %97 = vector.broadcast %cst_9 : f32 to vector<2x8x128xf32>
    %98 = arith.mulf %97, %86 : vector<2x8x128xf32>
    %99 = arith.subf %98, %96 : vector<2x8x128xf32>
    %cst_10 = arith.constant 1.000000e-15 : f32
    %100 = vector.broadcast %cst_10 : f32 to vector<2x8x128xf32>
    %101 = arith.maximumf %99, %100 : vector<2x8x128xf32>
    %cst_11 = arith.constant 5.000000e-01 : f32
    %102 = vector.broadcast %cst_11 : f32 to vector<2x8x128xf32>
    %103 = arith.mulf %102, %86 : vector<2x8x128xf32>
    %104 = arith.addf %103, %96 : vector<2x8x128xf32>
    %cst_12 = arith.constant 1.000000e-15 : f32
    %105 = vector.broadcast %cst_12 : f32 to vector<2x8x128xf32>
    %106 = arith.maximumf %104, %105 : vector<2x8x128xf32>
    %107 = math.rsqrt %106 : vector<2x8x128xf32>
    %108 = arith.maximumf %101, %107 : vector<2x8x128xf32>
    %109 = arith.addf %106, %108 : vector<2x8x128xf32>
    %110 = arith.mulf %106, %108 : vector<2x8x128xf32>
    %111 = math.log %110 : vector<2x8x128xf32>
    %cst_13 = arith.constant 5.000000e-01 : f32
    %112 = vector.broadcast %cst_13 : f32 to vector<2x8x128xf32>
    %113 = arith.mulf %112, %111 : vector<2x8x128xf32>
    %cst_14 = arith.constant 5.000000e-01 : f32
    %114 = arith.mulf %cst_14, %4 : f32
    %cst_15 = arith.constant 2.000000e+00 : f32
    %115 = vector.broadcast %cst_15 : f32 to vector<2x8x128xf32>
    %116 = arith.subf %109, %115 : vector<2x8x128xf32>
    %117 = vector.broadcast %114 : f32 to vector<2x8x128xf32>
    %118 = arith.mulf %117, %116 : vector<2x8x128xf32>
    %119 = vector.broadcast %4 : f32 to vector<2x8x128xf32>
    %120 = arith.mulf %119, %113 : vector<2x8x128xf32>
    %121 = arith.subf %118, %120 : vector<2x8x128xf32>
    %cst_16 = arith.constant 5.000000e-01 : f32
    %122 = arith.mulf %cst_16, %3 : f32
    %123 = arith.mulf %113, %113 : vector<2x8x128xf32>
    %124 = vector.broadcast %122 : f32 to vector<2x8x128xf32>
    %125 = arith.mulf %124, %123 : vector<2x8x128xf32>
    %126 = arith.addf %121, %125 : vector<2x8x128xf32>
    %cst_17 = arith.constant 1.000000e+00 : f32
    %127 = vector.broadcast %cst_17 : f32 to vector<2x8x128xf32>
    %128 = arith.cmpf olt, %106, %127 : vector<2x8x128xf32>
    %cst_18 = arith.constant 0.000000e+00 : f32
    %129 = vector.broadcast %cst_18 : f32 to vector<2x8x128xf32>
    %130 = arith.select %128, %129, %126 : vector<2x8x128xi1>, vector<2x8x128xf32>
    %c0_19 = arith.constant 0 : index
    %c0_20 = arith.constant 0 : index
    %c0_21 = arith.constant 0 : index
    %131 = vector.load %arg6[%c0_19, %c0_20, %c0_21] : memref<2x8x128xf32, #tpu.memory_space<vmem>>, vector<2x8x128xf32>
    %132 = vector.shape_cast %28 : vector<8x128xf32> to vector<1x8x128xf32>
    %133 = vector.broadcast %132 : vector<1x8x128xf32> to vector<2x8x128xf32>
    %134 = arith.mulf %130, %133 : vector<2x8x128xf32>
    %135 = arith.addf %131, %134 : vector<2x8x128xf32>
    %c0_22 = arith.constant 0 : index
    %c0_23 = arith.constant 0 : index
    %c0_24 = arith.constant 0 : index
    %136 = vector.load %arg6[%c0_22, %c0_23, %c0_24] : memref<2x8x128xf32, #tpu.memory_space<vmem>>, vector<2x8x128xf32>
    tpu.vector_store %arg6[%c0_22, %c0_23, %c0_24], %135 {strides = array<i32>} : memref<2x8x128xf32, #tpu.memory_space<vmem>>, vector<2x8x128xf32>,
    %c0_i32_25 = arith.constant 0 : i32
    %137 = arith.cmpi eq, %arg1, %c0_i32_25 : i32
    %138 = arith.extui %137 : i1 to i32
    %c0_i32_26 = arith.constant 0 : i32
    %139 = arith.cmpi ne, %138, %c0_i32_26 : i32
    scf.if %139 {
      %c0_27 = arith.constant 0 : index
      %c0_28 = arith.constant 0 : index
      %c0_29 = arith.constant 0 : index
      %140 = vector.load %arg6[%c0_27, %c0_28, %c0_29] : memref<2x8x128xf32, #tpu.memory_space<vmem>>, vector<2x8x128xf32>
      %cst_30 = arith.constant dense<0.000000e+00> : vector<2x8xf32>
      %141 = vector.multi_reduction <add>, %140, %cst_30 [2] : vector<2x8x128xf32> to vector<2x8xf32>
      %cst_31 = arith.constant dense<0.000000e+00> : vector<2xf32>
      %142 = vector.multi_reduction <add>, %141, %cst_31 [1] : vector<2x8xf32> to vector<2xf32>
      %143 = vector.shape_cast %142 : vector<2xf32> to vector<1x2x1xf32>
      %c0_32 = arith.constant 0 : index
      %c0_33 = arith.constant 0 : index
      %c0_34 = arith.constant 0 : index
      %144 = vector.load %arg5[%c0_32, %c0_33, %c0_34] : memref<1x2x1xf32, #tpu.memory_space<vmem>>, vector<1x2x1xf32>
      tpu.vector_store %arg5[%c0_32, %c0_33, %c0_34], %143 {strides = array<i32>} : memref<1x2x1xf32, #tpu.memory_space<vmem>>, vector<1x2x1xf32>,
    } else {
    }
    return
  }
  func.func @transform_0(%arg0: i32, %arg1: i32) -> i32 {
    %c0_i32 = arith.constant 0 : i32
    %c0_i32_0 = arith.constant 0 : i32
    return %c0_i32 : i32
  }
  func.func @transform_1(%arg0: i32, %arg1: i32) -> (i32, i32, i32, i32) {
    %c1_i32 = arith.constant 1 : i32
    %0 = arith.muli %arg0, %c1_i32 : i32
    %1 = arith.addi %0, %arg1 : i32
    %c0_i32 = arith.constant 0 : i32
    %c0_i32_0 = arith.constant 0 : i32
    %c0_i32_1 = arith.constant 0 : i32
    %c0_i32_2 = arith.constant 0 : i32
    return %c0_i32, %c0_i32_0, %1, %c0_i32_1 : i32, i32, i32, i32
  }
  func.func @transform_2(%arg0: i32, %arg1: i32) -> (i32, i32, i32) {
    %c1_i32 = arith.constant 1 : i32
    %0 = arith.muli %arg0, %c1_i32 : i32
    %1 = arith.addi %0, %arg1 : i32
    %c0_i32 = arith.constant 0 : i32
    %c0_i32_0 = arith.constant 0 : i32
    %c0_i32_1 = arith.constant 0 : i32
    return %c0_i32, %1, %c0_i32_0 : i32, i32, i32
  }
  func.func @transform_3(%arg0: i32, %arg1: i32) -> (i32, i32, i32) {
    %c0_i32 = arith.constant 0 : i32
    %c0_i32_0 = arith.constant 0 : i32
    %c0_i32_1 = arith.constant 0 : i32
    return %arg0, %c0_i32, %c0_i32_0 : i32, i32, i32
  }
}

</mosaic_0001>

<llo_original>
// kernel: cstri_energy_pallas.1
$region0: #{cstri_energy_pallas.1}
  #allocation0 [shape = 'u32[]', space=smem, size = 0x4, offset = 0x4, fixed_abs, tag = 'smem constant byte address 0x4 - core index']
  #allocation1 [shape = 'u32[144,128]{1,0:T(1,128)}', space=vmem, size = 0x12000, scoped, tag = 'internal scratch']
  #allocation2 [shape = 'f32[2,8,128]{2,1,0:T(8,128)}', space=vmem, size = 0x2000, scoped, tag = 'scratch operand']
  %s0 = inlined_call_operand.vmem [shape: f32[2], index: 0, kind: input, shape index: {}]
  %s1 = inlined_call_operand.vmem [shape: f32[6,2,8,128], index: 1, kind: input, shape index: {}]
  %s2 = inlined_call_operand.vmem [shape: f32[5,8,128], index: 2, kind: input, shape index: {}]
  %s3 = inlined_call_operand.vmem [shape: f32[1,2,1], index: 3, kind: output, shape index: {}]
  %s4 = sld [smem:[#allocation0]]
  $region34: #{cstri_energy_pallas.1} parent=0
    _
  %s6 = ssub.s32 1, %s4
  %s7 = scalar_select 0, %s6, %s4
  $region1: #{cstri_energy_pallas.1} parent=0
    #allocation3 [shape = 'u8[512]{0}', space=smem, size = 0x200, scoped, tag = 'input window, operand 0, single buffered']
    #allocation4 [shape = 's32[1]{0}', space=sflag, size = 0x4, scoped, tag = 'scoped memory for cstri_energy_pallas.1']
    %8 = vsyncpa [#allocation4], 0
    // Predicated region
    $region2: #{cstri_energy_pallas.1} parent=1 // pred_check
      _
    $region3: #{cstri_energy_pallas.1} parent=1 // pred_check_branch
      %10 = sbr.rel (0) target = $region5
    $region4: #{cstri_energy_pallas.1} parent=1 // pred_region
      %s12 = ssub.s32 16, 16
      %13 = vsyncadd [#allocation4], %s12
      %s15 = sshll.u32 %s0, 4
      %s16 = int_to_ptr.vmem [resolvable:$true] %s15
      %18 = dma.vmem_to_smem %s16, 16, [#allocation3], [#allocation4]
    $region5: #{cstri_energy_pallas.1} parent=1 // pred_fallthru
      _
    // Predicated region
    $region6: #{cstri_energy_pallas.1} parent=1 // pred_check
      _
    $region7: #{cstri_energy_pallas.1} parent=1 // pred_check_branch
      %20 = sbr.rel (0) target = $region9
    $region8: #{cstri_energy_pallas.1} parent=1 // pred_region
      %s21 = sadd.s32 0, 0
      %p22 = scmp.lt.s32.totalorder %s21, 0
      %s23 = scalar_select %p22, %s21, 0
      %s24 = smul.addr %s23, 8
      %s25 = scalar_lea.vmem %s1, %s24
      %s26 = sadd.s32 0, 0
    $region9: #{cstri_energy_pallas.1} parent=1 // pred_fallthru
      _
    // Predicated region
    $region10: #{cstri_energy_pallas.1} parent=1 // pred_check
      _
    $region11: #{cstri_energy_pallas.1} parent=1 // pred_check_branch
      %28 = sbr.rel (0) target = $region13
    $region12: #{cstri_energy_pallas.1} parent=1 // pred_region
      %s29 = sadd.s32 0, 0
      %p30 = scmp.lt.s32.totalorder %s29, 0
      %s31 = scalar_select %p30, %s29, 0
      %s32 = smul.addr %s31, 8
      %s33 = scalar_lea.vmem %s2, %s32
      %s34 = sadd.s32 0, 0
    $region13: #{cstri_energy_pallas.1} parent=1 // pred_fallthru
      _
    // Predicated region
    $region14: #{cstri_energy_pallas.1} parent=1 // pred_check
      _
    $region15: #{cstri_energy_pallas.1} parent=1 // pred_check_branch
      %36 = sbr.rel (0) target = $region17
    $region16: #{cstri_energy_pallas.1} parent=1 // pred_region
      %37 = dma.done [#allocation4], 16
    $region17: #{cstri_energy_pallas.1} parent=1 // pred_fallthru
      _
    %38 = sfence
    %s39 = sadd.s32 0, 0
    %p40 = scmp.lt.s32.totalorder %s39, 0
    %s41 = scalar_select %p40, %s39, 0
    %s42 = smul.addr %s41, 8
    %s43 = scalar_lea.vmem %s1, %s42
    %s44 = sadd.s32 0, 0
    %p45 = scmp.lt.s32.totalorder %s44, 0
    %s46 = scalar_select %p45, %s44, 0
    %s47 = smul.addr %s46, 8
    %s48 = scalar_lea.vmem %s2, %s47
    %s49 = sadd.s32 0, 0
    %p50 = scmp.lt.s32.totalorder %s49, 0
    %s51 = scalar_select %p50, %s49, 0
    %s52 = smul.addr %s51, 8
    %s53 = scalar_lea.vmem %s1, %s52
    %s54 = sadd.s32 0, 0
    %s55 = sadd.s32 0, 0
    %p56 = scmp.lt.s32.totalorder %s55, 0
    %s57 = scalar_select %p56, %s55, 0
    %s58 = smul.addr %s57, 8
    %s59 = scalar_lea.vmem %s2, %s58
    %s60 = sadd.s32 0, 0
    %p61 = scmp.eq.s32.totalorder 0, 0
    // Predicated region
    $region18: #{cstri_energy_pallas.1} parent=1 // pred_check
      %p62 = pneg %p61
    $region19: #{cstri_energy_pallas.1} parent=1 // pred_check_branch
      %64 = sbr.rel (%p62) target = $region21
    $region20: #{cstri_energy_pallas.1} parent=1 // pred_region
      %65 = vst [vmem:[#allocation2] sm:$0xff] 0.0
      %66 = vst [vmem:[#allocation2 + $0x8] sm:$0xff] 0.0
    $region21: #{cstri_energy_pallas.1} parent=1 // pred_fallthru
      _
    %s67 = sld [smem:[#allocation3]]
    %s68 = sld [smem:[#allocation3 + $0x1]]
    %v69 = vld [vmem:[%s53] sm:$0xff]
    %v70 = vld [vmem:[%s53 + $0x8] sm:$0xff]
    %v71 = vld [vmem:[%s53 + $0x10] sm:$0xff]
    %v72 = vld [vmem:[%s53 + $0x18] sm:$0xff]
    %v73 = vld [vmem:[%s53 + $0x20] sm:$0xff]
    %v74 = vld [vmem:[%s53 + $0x28] sm:$0xff]
    %v75 = vld [vmem:[%s53 + $0x30] sm:$0xff]
    %v76 = vld [vmem:[%s53 + $0x38] sm:$0xff]
    %v77 = vld [vmem:[%s53 + $0x40] sm:$0xff]
    %v78 = vld [vmem:[%s53 + $0x48] sm:$0xff]
    %v79 = vld [vmem:[%s53 + $0x50] sm:$0xff]
    %v80 = vld [vmem:[%s53 + $0x58] sm:$0xff]
    %v81 = vld [vmem:[%s59] sm:$0xff]
    %v82 = vld [vmem:[%s59 + $0x8] sm:$0xff]
    %v83 = vld [vmem:[%s59 + $0x10] sm:$0xff]
    %v84 = vld [vmem:[%s59 + $0x18] sm:$0xff]
    %v85 = vld [vmem:[%s59 + $0x20] sm:$0xff]
    %v86 = vmul.f32 %v69, %v81
    %v87 = vmul.f32 %v70, %v81
    %v88 = vmul.f32 %v75, %v82
    %v89 = vmul.f32 %v76, %v82
    %v90 = vadd.f32 %v86, %v88
    %v91 = vadd.f32 %v87, %v89
    %v92 = vmul.f32 %v71, %v81
    %v93 = vmul.f32 %v72, %v81
    %v94 = vmul.f32 %v77, %v82
    %v95 = vmul.f32 %v78, %v82
    %v96 = vadd.f32 %v92, %v94
    %v97 = vadd.f32 %v93, %v95
    %v98 = vmul.f32 %v73, %v81
    %v99 = vmul.f32 %v74, %v81
    %v100 = vmul.f32 %v79, %v82
    %v101 = vmul.f32 %v80, %v82
    %v102 = vadd.f32 %v98, %v100
    %v103 = vadd.f32 %v99, %v101
    %v104 = vmul.f32 %v69, %v83
    %v105 = vmul.f32 %v70, %v83
    %v106 = vmul.f32 %v75, %v84
    %v107 = vmul.f32 %v76, %v84
    %v108 = vadd.f32 %v104, %v106
    %v109 = vadd.f32 %v105, %v107
    %v110 = vmul.f32 %v71, %v83
    %v111 = vmul.f32 %v72, %v83
    %v112 = vmul.f32 %v77, %v84
    %v113 = vmul.f32 %v78, %v84
    %v114 = vadd.f32 %v110, %v112
    %v115 = vadd.f32 %v111, %v113
    %v116 = vmul.f32 %v73, %v83
    %v117 = vmul.f32 %v74, %v83
    %v118 = vmul.f32 %v79, %v84
    %v119 = vmul.f32 %v80, %v84
    %v120 = vadd.f32 %v116, %v118
    %v121 = vadd.f32 %v117, %v119
    %v122 = vmul.f32 %v90, %v90
    %v123 = vmul.f32 %v91, %v91
    %v124 = vmul.f32 %v96, %v96
    %v125 = vmul.f32 %v97, %v97
    %v126 = vadd.f32 %v122, %v124
    %v127 = vadd.f32 %v123, %v125
    %v128 = vmul.f32 %v102, %v102
    %v129 = vmul.f32 %v103, %v103
    %v130 = vadd.f32 %v126, %v128
    %v131 = vadd.f32 %v127, %v129
    %v132 = vmul.f32 %v108, %v108
    %v133 = vmul.f32 %v109, %v109
    %v134 = vmul.f32 %v114, %v114
    %v135 = vmul.f32 %v115, %v115
    %v136 = vadd.f32 %v132, %v134
    %v137 = vadd.f32 %v133, %v135
    %v138 = vmul.f32 %v120, %v120
    %v139 = vmul.f32 %v121, %v121
    %v140 = vadd.f32 %v136, %v138
    %v141 = vadd.f32 %v137, %v139
    %v142 = vmul.f32 %v90, %v108
    %v143 = vmul.f32 %v91, %v109
    %v144 = vmul.f32 %v96, %v114
    %v145 = vmul.f32 %v97, %v115
    %v146 = vadd.f32 %v142, %v144
    %v147 = vadd.f32 %v143, %v145
    %v148 = vmul.f32 %v102, %v120
    %v149 = vmul.f32 %v103, %v121
    %v150 = vadd.f32 %v146, %v148
    %v151 = vadd.f32 %v147, %v149
    %v152 = vadd.f32 %v130, %v140
    %v153 = vadd.f32 %v131, %v141
    %v154 = vmul.f32 %v130, %v140
    %v155 = vmul.f32 %v131, %v141
    %v156 = vmul.f32 %v150, %v150
    %v157 = vmul.f32 %v151, %v151
    %v158 = vsub.f32 %v154, %v156
    %v159 = vsub.f32 %v155, %v157
    %v160 = vmul.f32 %v152, 0.25
    %v161 = vmul.f32 %v153, 0.25
    %v162 = vmul.f32 %v160, %v152
    %v163 = vmul.f32 %v161, %v153
    %v164 = vsub.f32 %v162, %v158
    %v165 = vsub.f32 %v163, %v159
    %v166 = vmax.f32 %v164, 1e-15
    %v167 = vmax.f32 %v165, 1e-15
    %v168 = vrsqrt.pop %v166
    %v169 = vmul.f32 %v166, %v168
    %vm170 = vcmp.eq.f32.partialorder %v166, inf
    %v171 = vsel %vm170, %v166, %v169
    %vm172 = vcmp.eq.f32.partialorder %v166, 0.0
    %v173 = vand.u32 %v166, 2147483648
    %v174 = vsel %vm172, %v173, %v171
    %v175 = vrsqrt.pop %v167
    %v176 = vmul.f32 %v167, %v175
    %vm177 = vcmp.eq.f32.partialorder %v167, inf
    %v178 = vsel %vm177, %v167, %v176
    %vm179 = vcmp.eq.f32.partialorder %v167, 0.0
    %v180 = vand.u32 %v167, 2147483648
    %v181 = vsel %vm179, %v180, %v178
    %v182 = vmul.f32 %v152, 0.5
    %v183 = vmul.f32 %v153, 0.5
    %v184 = vsub.f32 %v182, %v174
    %v185 = vsub.f32 %v183, %v181
    %v186 = vmax.f32 %v184, 1e-15
    %v187 = vmax.f32 %v185, 1e-15
    %v188 = vadd.f32 %v182, %v174
    %v189 = vadd.f32 %v183, %v181
    %v190 = vmax.f32 %v188, 1e-15
    %v191 = vmax.f32 %v189, 1e-15
    %v192 = vrsqrt.pop %v190
    %v193 = vrsqrt.pop %v191
    %v194 = vmax.f32 %v186, %v192
    %v195 = vmax.f32 %v187, %v193
    %v196 = vadd.f32 %v190, %v194
    %v197 = vadd.f32 %v191, %v195
    %v198 = vmul.f32 %v190, %v194
    %v199 = vmul.f32 %v191, %v195
    %v200 = vlog2.pop %v198
    %v201 = vmul.f32 %v200, 0.6931472
    %v202 = vlog2.pop %v199
    %v203 = vmul.f32 %v202, 0.6931472
    %v204 = vmul.f32 %v201, 0.5
    %v205 = vmul.f32 %v203, 0.5
    %s206 = smul.f32 %s68, 0.5
    %v207 = vsub.f32 %v196, 2.0
    %v208 = vsub.f32 %v197, 2.0
    %v209 = vstv %s206
    %v210 = vmul.f32 %v209, %v207
    %v211 = vmul.f32 %v209, %v208
    %v212 = vstv %s68
    %v213 = vmul.f32 %v212, %v204
    %v214 = vmul.f32 %v212, %v205
    %v215 = vsub.f32 %v210, %v213
    %v216 = vsub.f32 %v211, %v214
    %s217 = smul.f32 %s67, 0.5
    %v218 = vmul.f32 %v204, %v204
    %v219 = vmul.f32 %v205, %v205
    %v220 = vstv %s217
    %v221 = vmul.f32 %v220, %v218
    %v222 = vmul.f32 %v220, %v219
    %v223 = vadd.f32 %v215, %v221
    %v224 = vadd.f32 %v216, %v222
    %vm225 = vcmp.lt.f32.partialorder %v190, 1.0
    %vm226 = vcmp.lt.f32.partialorder %v191, 1.0
    %v227 = vsel %vm225, 0.0, %v223
    %v228 = vsel %vm226, 0.0, %v224
    %v229 = vld [vmem:[#allocation2] sm:$0xff]
    %v230 = vld [vmem:[#allocation2 + $0x8] sm:$0xff]
    %v231 = vmul.f32 %v227, %v85
    %v232 = vmul.f32 %v228, %v85
    %v233 = vadd.f32 %v229, %v231
    %v234 = vadd.f32 %v230, %v232
    %235 = vst [vmem:[#allocation2] sm:$0xff] %v233
    %236 = vst [vmem:[#allocation2 + $0x8] sm:$0xff] %v234
    // Predicated region
    $region22: #{cstri_energy_pallas.1} parent=1 // pred_check
      %p237 = pneg %p61
    $region23: #{cstri_energy_pallas.1} parent=1 // pred_check_branch
      %239 = sbr.rel (%p237) target = $region25
    $region24: #{cstri_energy_pallas.1} parent=1 // pred_region
      %v240 = vld [vmem:[#allocation2] sm:$0xff]
      %v241 = vld [vmem:[#allocation2 + $0x8] sm:$0xff]
      %242 = vadd.xlane.f32.xlu0 %v240
      %v243 = vpop.xlane.xlu0 %242
      %244 = vadd.xlane.f32.xlu0 %v241
      %v245 = vpop.xlane.xlu0 %244
      %v248 = vlaneseq
      %v249 = vand.u32 %v248, 127
      %v250 = vlaneseq
      %v251 = vshrl.u32 %v250, 7
      %v252 = vsub.s32 %v249, %v251
      %v253 = vrot.slane %v243, %v252
      %v254 = vlaneseq
      %v255 = vshrl.u32 %v254, 7
      %v256 = vsub.s32 %v249, %v255
      %v257 = vrot.slane %v245, %v256
      %vm258 = vcmask 1041409
      %v259 = vsel %vm258, %v257, %v253
      %vm261 = vcmask 58368
      %v262 = vsel %vm261, %v259, 0.0
      %263 = vadd.xlane.f32.xlu0 %v262
      %v264 = vpop.xlane.xlu0 %263
      %vm265 = vcmask 1024
      %266 = vst.msk [vmem:[%s3] sm:$0x3] %vm265, %v264
    $region25: #{cstri_energy_pallas.1} parent=1 // pred_fallthru
      _
    // Predicated region
    $region26: #{cstri_energy_pallas.1} parent=1 // pred_check
      _
    $region27: #{cstri_energy_pallas.1} parent=1 // pred_check_branch
      %268 = sbr.rel (0) target = $region29
    $region28: #{cstri_energy_pallas.1} parent=1 // pred_region
      _
    $region29: #{cstri_energy_pallas.1} parent=1 // pred_fallthru
      _
    // Predicated region
    $region30: #{cstri_energy_pallas.1} parent=1 // pred_check
      _
    $region31: #{cstri_energy_pallas.1} parent=1 // pred_check_branch
      %270 = sbr.rel (0) target = $region33
    $region32: #{cstri_energy_pallas.1} parent=1 // pred_region
      _
    $region33: #{cstri_energy_pallas.1} parent=1 // pred_fallthru
      _
    %271 = vsyncpa [#allocation4], 1

</llo_original>
